<compile_context>
chip_gen: v7x
topology: tpu7x:2x2x1
jax: 0.10.0
libtpu: 0.0.40
codegen_flags: <defaults>
</compile_context>

<pallas_src>
from functools import partial

import numpy as np
import jax
import jax.numpy as jnp
from jax.experimental import pallas as pl
from jax.experimental.pallas import tpu as pltpu

# ---------------- config (synthetic, small) ----------------
B, Q, D = 2, 8, 32
NUM_TOKEN_CLS = 4            # num_token_classes = NUM_TOKEN_CLS + 1 = 5
NUM_LABEL_CLS = 4
NUM_EDGE_CLS = 4
FOCAL_ALPHA = 0.25
GAMMA = 2.0
W_TOKEN, W_LABEL, W_EDGE = 1.0, 1.0, 1.0
FG_EDGE, BG_EDGE = 4, 6

LANES = 128                  # lane-dense feature / weight dimension
N_ROWS = B * Q               # 16 (multiple of 8 sublanes)
E_PAD = 32                   # max sampled edges, padded to a multiple of 8
C_TOK = NUM_TOKEN_CLS + 1
C_LAB = NUM_LABEL_CLS
C_EDGE = NUM_EDGE_CLS
FEAT_W = 3 * D               # 96 raw edge-feature width (+1 bias col, 0-pad to 128)
NEG_INF = -1e30
assert E_PAD >= N_ROWS

_VMEM = pl.BlockSpec(memory_space=pltpu.MemorySpace.VMEM)
_SMEM = pl.BlockSpec(memory_space=pltpu.MemorySpace.SMEM)


# ---------------- fused Pallas kernel ----------------
def _fused_loss_kernel(tok_x_ref, lab_x_ref, ids_ref, feat_ref, w_ref, norms_ref,
                       out_ref, *, n_rows, q, c_edge, alpha, gamma,
                       w_token, w_label, w_edge):
    ids = ids_ref[...]                                       # [E_PAD, 3] int32

    # ----- (1) sigmoid focal loss over token logits (all B*Q rows, all classes) ----
    x = tok_x_ref[...]                                       # [N, C_TOK] f32
    tid = ids[:n_rows, 0:1]                                  # [N, 1] int32
    lane = jax.lax.broadcasted_iota(jnp.int32, x.shape, 1)
    t = (lane == tid).astype(jnp.float32)                    # one-hot built in-kernel
    # single transcendental: e = exp(-|x|) feeds both the sigmoid and log1p terms
    e = jnp.exp(-jnp.abs(x))
    inv1pe = pl.reciprocal(1.0 + e, approx=True)
    prob = jnp.where(x >= 0.0, inv1pe, e * inv1pe)           # sigmoid(x)
    ce = jnp.maximum(x, 0.0) - x * t + jnp.log(1.0 + e)      # stable BCE-with-logits
    p_t = prob * t + (1.0 - prob) * (1.0 - t)
    mod = 1.0 - p_t
    mod = mod * mod if gamma == 2.0 else mod ** gamma        # gamma==2 fast path
    focal = ce * mod
    if alpha is not None and alpha >= 0.0:
        focal = (alpha * t + (1.0 - alpha) * (1.0 - t)) * focal
    tok_sum = jnp.sum(focal, axis=(0, 1), keepdims=True)     # (1, 1)

    # ----- (2) label cross-entropy: plain mean over all B*Q rows ------------------
    xl = lab_x_ref[...]                                      # [N, C_LAB] f32
    lid = ids[:n_rows, 1:2]
    lane_l = jax.lax.broadcasted_iota(jnp.int32, xl.shape, 1)
    m = jnp.max(xl, axis=-1, keepdims=True)
    lse = m + jnp.log(jnp.sum(jnp.exp(xl - m), axis=-1, keepdims=True))
    picked = jnp.sum(jnp.where(lane_l == lid, xl, 0.0), axis=-1, keepdims=True)
    lab_sum = jnp.sum(lse - picked, axis=(0, 1), keepdims=True)

    # ----- (3) relation_embed linear (bias folded into W, one bf16 MXU tile) + CE --
    logits = jnp.dot(feat_ref[...], w_ref[...],
                     preferred_element_type=jnp.float32)     # [E_PAD, 128] f32
    eid = ids[:, 2:3]                                        # [E_PAD, 1], -1 = pad row
    lane_e = jax.lax.broadcasted_iota(jnp.int32, logits.shape, 1)
    row_ok = (eid >= 0).astype(jnp.float32)
    xe = jnp.where(lane_e < c_edge, logits, NEG_INF)         # mask padded class lanes
    me = jnp.max(xe, axis=-1, keepdims=True)
    lse_e = me + jnp.log(jnp.sum(jnp.exp(xe - me), axis=-1, keepdims=True))
    picked_e = jnp.sum(jnp.where(lane_e == eid, logits, 0.0), axis=-1, keepdims=True)
    edge_sum = jnp.sum((lse_e - picked_e) * row_ok, axis=(0, 1), keepdims=True)

    # ----- normalisation + weighted total, folded in-kernel (norms from SMEM) ------
    nt = jnp.maximum(norms_ref[0], 1.0)                      # num valid targets
    ne = jnp.maximum(norms_ref[1], 1.0)                      # num sampled edges
    # Matches this module's spec: sigmoid_focal_loss(...).sum()/num_targets * Q.
    loss_tok = tok_sum / nt * float(q)
    loss_lab = lab_sum * (1.0 / float(n_rows))               # all-ones weights -> mean
    loss_edge = edge_sum / ne
    total = w_token * loss_tok + w_label * loss_lab + w_edge * loss_edge

    lane_o = jax.lax.broadcasted_iota(jnp.int32, out_ref.shape, 1)
    out_ref[...] = (jnp.where(lane_o == 0, loss_tok, 0.0)
                    + jnp.where(lane_o == 1, loss_lab, 0.0)
                    + jnp.where(lane_o == 2, loss_edge, 0.0)
                    + jnp.where(lane_o == 3, total, 0.0))


# Grid-less single invocation: all operands are tiny and fit VMEM comfortably.
# TODO(synk): at production shapes (Q~900, C~1000+, thousands of edges) add a
#   row-grid axis marked "parallel" (uses v7x's 2nd TensorCore; no-op on
#   v5e/v6e) with the reduction axis "arbitrary" + a pl.when accumulator; size
#   tiles against v7x's 64 MiB physical / 32 MiB scoped VMEM (cap ~512-1024
#   rows x C_pad, set vmem_limit_bytes); batch edges into >=128/256-row MXU
#   tiles; move the edge gather in-kernel via PrefetchScalarGridSpec +
#   pl.Element row-gather; run the transcendentals in bf16 on v6e/v7x
#   (f32-only EUP on v5e -> trim padded lanes instead).
_fused_losses_call = pl.pallas_call(
    partial(_fused_loss_kernel, n_rows=N_ROWS, q=Q, c_edge=C_EDGE,
            alpha=FOCAL_ALPHA, gamma=GAMMA,
            w_token=W_TOKEN, w_label=W_LABEL, w_edge=W_EDGE),
    out_shape=jax.ShapeDtypeStruct((1, LANES), jnp.float32),
    in_specs=[_VMEM, _VMEM, _VMEM, _VMEM, _VMEM, _SMEM],
    out_specs=_VMEM,
)


# ---------------- jitted device path (gathers + kernel, single dispatch) --------
@jax.jit
def _device_forward(tok_logits, lab_logits, object_token, relation_token,
                    ids_tab, head_idx, tail_idx, batch_idx, norms, w_bf16):
    tok_x = tok_logits.reshape(N_ROWS, C_TOK).astype(jnp.float32)
    lab_x = lab_logits.reshape(N_ROWS, C_LAB).astype(jnp.float32)

    # edge-feature assembly on device: [head_emb | tail_emb | relation_token | 1 | 0]
    # (the trailing ones column folds the linear bias into the weight matrix)
    obj = object_token.reshape(N_ROWS, D).astype(jnp.float32)
    rel = relation_token.astype(jnp.float32)
    feat = jnp.concatenate(
        [jnp.take(obj, head_idx, axis=0),
         jnp.take(obj, tail_idx, axis=0),
         jnp.take(rel, batch_idx, axis=0),
         jnp.ones((E_PAD, 1), jnp.float32),
         jnp.zeros((E_PAD, LANES - FEAT_W - 1), jnp.float32)],
        axis=-1).astype(jnp.bfloat16)                        # [E_PAD, 128] bf16

    out = _fused_losses_call(tok_x, lab_x, ids_tab, feat, w_bf16, norms)
    return {'tokens': out[0, 0], 'labels': out[0, 1],
            'edges': out[0, 2], 'total': out[0, 3]}


# ---------------- SetCriterion wrapper ----------------
class SetCriterionPallas:
    def __init__(self, key):
        self.num_token_classes = NUM_TOKEN_CLS + 1
        self.num_label_classes = NUM_LABEL_CLS
        self.focal_alpha = FOCAL_ALPHA
        self.weight_dict = {'tokens': W_TOKEN, 'labels': W_LABEL, 'edges': W_EDGE}
        self.fg_edge = FG_EDGE
        self.bg_edge = BG_EDGE
        # relation_embed: Linear(3*D -> NUM_EDGE_CLS), deterministic init.
        k1, k2 = jax.random.split(key)
        lim = 1.0 / np.sqrt(3 * D)
        rel_W = jax.random.uniform(k1, (FEAT_W, NUM_EDGE_CLS), jnp.float32, -lim, lim)
        rel_b = jax.random.uniform(k2, (NUM_EDGE_CLS,), jnp.float32, -lim, lim)
        # Bias folded in as row FEAT_W; padded once to a single aligned 128x128
        # MXU tile and held in bf16 (halves the weight DMA, native MXU rate).
        w_ext = jnp.zeros((LANES, LANES), jnp.float32)
        w_ext = w_ext.at[:FEAT_W, :NUM_EDGE_CLS].set(rel_W)
        w_ext = w_ext.at[FEAT_W, :NUM_EDGE_CLS].set(rel_b)
        self.rel_W_bf16 = w_ext.astype(jnp.bfloat16)

    # TODO(synk): Hungarian matcher (external module in torch) replaced by a
    # deterministic identity matching — the matcher itself has no Pallas equivalent.
    def _matcher(self, valid_targets):
        return [(np.arange(len(t['tokens'])), np.arange(len(t['tokens'])))
                for t in valid_targets]

    # ---- forward ----
    def forward(self, h, outputs, targets):
        object_token, relation_token = h

        # host-side filtering of invalid tokens / edges (targets are host data)
        valid_targets = []
        for t in targets:
            keep = t['tokens'] != 0
            vt = {'tokens': t['tokens'][keep], 'labels': t['labels'][keep]}
            ekeep = t['edges'][:, 2] != 0
            vt['edges'] = (t['edges'][ekeep] if ekeep.any()
                           else np.zeros((0, 3), np.int64))
            valid_targets.append(vt)

        indices = self._matcher(valid_targets)
        num_targets = float(sum(len(t['tokens']) for t in valid_targets))

        # tiny int32 class-id tables (one-hot / picked logit built in-kernel)
        tok_ids = np.zeros((B, Q), np.int32)
        lab_ids = np.zeros((B, Q), np.int32)
        for b, (src, jj) in enumerate(indices):
            src_np = np.asarray(src)
            tok_ids[b, src_np] = np.asarray(valid_targets[b]['tokens'])[jj].astype(np.int32)
            lab_ids[b, src_np] = np.asarray(valid_targets[b]['labels'])[jj].astype(np.int32)

        # edge set construction -> flat gather indices into object_token[B*Q, D]
        heads, tails, bidx, elbl = [], [], [], []
        for b, ((src, jj), vt) in enumerate(zip(indices, valid_targets)):
            edges = np.asarray(vt['edges']).reshape(-1, 3)
            rel_label = edges[:, 2]
            tgt_e = edges[:, :2]
            if tgt_e.shape[0] > 0:
                keep = np.array([(e[0] in jj) and (e[1] in jj) for e in tgt_e], bool)
            else:
                keep = np.zeros((0,), bool)
            remap = {int(k): idx for idx, k in enumerate(jj)}
            fe = np.array([[remap[int(a)], remap[int(c)]] for a, c in tgt_e[keep]],
                          np.int64).reshape(-1, 2)
            rel_label = rel_label[keep]
            n_match = len(vt['tokens'])
            full_adj = np.ones((n_match, n_match)) - np.eye(n_match)
            if fe.shape[0] > 0:
                full_adj[fe[:, 0], fe[:, 1]] = 0
            neg = np.argwhere(full_adj).astype(np.int64)
            # TODO(synk): torch uses torch.randperm for fg/bg subsampling and a final
            # shuffle; deterministic take-first here (mean CE is shuffle-invariant).
            if fe.shape[0] > self.fg_edge:
                fe, rel_label = fe[:self.fg_edge], rel_label[:self.fg_edge]
            if neg.shape[0] >= self.bg_edge:
                neg = neg[:self.bg_edge]
            all_edges = np.concatenate([fe, neg], 0).astype(np.int64)
            if all_edges.shape[0] == 0:
                continue
            src_np = np.asarray(src)
            heads.append((b * Q + src_np[all_edges[:, 0]]).astype(np.int32))
            tails.append((b * Q + src_np[all_edges[:, 1]]).astype(np.int32))
            bidx.append(np.full((all_edges.shape[0],), b, np.int32))
            elbl.append(np.concatenate(
                [rel_label, np.zeros((neg.shape[0],), np.int64)], 0).astype(np.int32))

        head_idx = np.concatenate(heads, 0) if heads else np.zeros((0,), np.int32)
        tail_idx = np.concatenate(tails, 0) if tails else np.zeros((0,), np.int32)
        batch_idx = np.concatenate(bidx, 0) if bidx else np.zeros((0,), np.int32)
        edge_lbl = np.concatenate(elbl, 0) if elbl else np.zeros((0,), np.int32)
        n_edges = int(head_idx.shape[0])
        assert n_edges <= E_PAD, f"n_edges={n_edges} exceeds static E_PAD={E_PAD}"

        def _pad1d(a, fill=0):
            out = np.full((E_PAD,), fill, np.int32)
            out[:a.shape[0]] = a
            return out

        # packed [E_PAD, 3] id table: col0/1 = token/label class ids (rows < B*Q),
        # col2 = edge class ids (rows < n_edges; -1 marks padded edge rows)
        ids_tab = np.full((E_PAD, 3), -1, np.int32)
        ids_tab[:N_ROWS, 0] = tok_ids.reshape(-1)
        ids_tab[:N_ROWS, 1] = lab_ids.reshape(-1)
        ids_tab[:, 2] = _pad1d(edge_lbl, -1)

        norms = np.array([num_targets, float(n_edges)], np.float32)
        return _device_forward(
            outputs['pred_token_logits'], outputs['pred_label_logits'],
            object_token, relation_token, ids_tab,
            _pad1d(head_idx), _pad1d(tail_idx), _pad1d(batch_idx),
            norms, self.rel_W_bf16)


# ---------------- main ----------------
if __name__ == "__main__":
    key = jax.random.PRNGKey(0)
    k_obj, k_rel, k_tok, k_lab, k_crit = jax.random.split(key, 5)
    object_token = jax.random.normal(k_obj, (B, Q, D), jnp.float32)
    relation_token = jax.random.normal(k_rel, (B, D), jnp.float32)
    outputs = {
        'pred_token_logits': jax.random.normal(k_tok, (B, Q, NUM_TOKEN_CLS + 1), jnp.float32),
        'pred_label_logits': jax.random.normal(k_lab, (B, Q, NUM_LABEL_CLS), jnp.float32),
    }
    # synthetic ground-truth (token id 0 and edge relation 0 mean "invalid")
    targets = [
        {'tokens': np.array([1, 2, 3, 0], np.int64),
         'labels': np.array([2, 1, 3, 0], np.int64),
         'edges': np.array([[0, 1, 1], [1, 2, 2], [0, 2, 0]], np.int64)},
        {'tokens': np.array([2, 4, 0, 0], np.int64),
         'labels': np.array([1, 3, 0, 0], np.int64),
         'edges': np.array([[0, 1, 3]], np.int64)},
    ]

    criterion = SetCriterionPallas(k_crit)
    losses = criterion.forward((object_token, relation_token), outputs, targets)
    jax.block_until_ready(losses['total'])
    print("KERNEL_OK")
</pallas_src>

<mosaic_0001>
module attributes {stable_mosaic.version = 11 : i64} {
  func.func @_fused_loss_kernel(%arg0: memref<16x5xf32, #tpu.memory_space<vmem>>, %arg1: memref<16x4xf32, #tpu.memory_space<vmem>>, %arg2: memref<32x3xi32, #tpu.memory_space<vmem>>, %arg3: memref<32x128xbf16, #tpu.memory_space<vmem>>, %arg4: memref<128x128xbf16, #tpu.memory_space<vmem>>, %arg5: memref<2xf32, #tpu.memory_space<smem>>, %arg6: memref<1x128xf32, #tpu.memory_space<vmem>>) attributes {dimension_semantics = [], scalar_prefetch = 0 : i64, scratch_operands = 0 : i64, tpu.core_type = #tpu.core_type<tc>} {
    %c0 = arith.constant 0 : index
    %c0_0 = arith.constant 0 : index
    %0 = vector.load %arg2[%c0, %c0_0] : memref<32x3xi32, #tpu.memory_space<vmem>>, vector<32x3xi32>
    %c0_1 = arith.constant 0 : index
    %c0_2 = arith.constant 0 : index
    %1 = vector.load %arg0[%c0_1, %c0_2] : memref<16x5xf32, #tpu.memory_space<vmem>>, vector<16x5xf32>
    %2 = vector.extract_strided_slice %0 {offsets = [0, 0], sizes = [16, 1], strides = [1, 1]} : vector<32x3xi32> to vector<16x1xi32>
    %3 = tpu.iota {dimensions = array<i32: 1>} : vector<16x5xi32>
    %4 = vector.broadcast %2 : vector<16x1xi32> to vector<16x5xi32>
    %5 = arith.cmpi eq, %3, %4 : vector<16x5xi32>
    %6 = arith.extui %5 : vector<16x5xi1> to vector<16x5xi32>
    %7 = arith.sitofp %6 : vector<16x5xi32> to vector<16x5xf32>
    %8 = math.absf %1 : vector<16x5xf32>
    %cst = arith.constant 0.000000e+00 : f32
    %9 = vector.broadcast %cst : f32 to vector<16x5xf32>
    %10 = arith.subf %9, %8 : vector<16x5xf32>
    %11 = math.exp %10 : vector<16x5xf32>
    %cst_3 = arith.constant 1.000000e+00 : f32
    %12 = vector.broadcast %cst_3 : f32 to vector<16x5xf32>
    %13 = arith.addf %12, %11 : vector<16x5xf32>
    %14 = tpu.reciprocal %13 {approx = true} : vector<16x5xf32> -> vector<16x5xf32>
    %cst_4 = arith.constant 0.000000e+00 : f32
    %15 = vector.broadcast %cst_4 : f32 to vector<16x5xf32>
    %16 = arith.cmpf oge, %1, %15 : vector<16x5xf32>
    %17 = arith.mulf %11, %14 : vector<16x5xf32>
    %18 = arith.select %16, %14, %17 : vector<16x5xi1>, vector<16x5xf32>
    %cst_5 = arith.constant 0.000000e+00 : f32
    %19 = vector.broadcast %cst_5 : f32 to vector<16x5xf32>
    %20 = arith.maximumf %1, %19 : vector<16x5xf32>
    %21 = arith.mulf %1, %7 : vector<16x5xf32>
    %22 = arith.subf %20, %21 : vector<16x5xf32>
    %cst_6 = arith.constant 1.000000e+00 : f32
    %23 = vector.broadcast %cst_6 : f32 to vector<16x5xf32>
    %24 = arith.addf %23, %11 : vector<16x5xf32>
    %25 = math.log %24 : vector<16x5xf32>
    %26 = arith.addf %22, %25 : vector<16x5xf32>
    %27 = arith.mulf %18, %7 : vector<16x5xf32>
    %cst_7 = arith.constant 1.000000e+00 : f32
    %28 = vector.broadcast %cst_7 : f32 to vector<16x5xf32>
    %29 = arith.subf %28, %18 : vector<16x5xf32>
    %cst_8 = arith.constant 1.000000e+00 : f32
    %30 = vector.broadcast %cst_8 : f32 to vector<16x5xf32>
    %31 = arith.subf %30, %7 : vector<16x5xf32>
    %32 = arith.mulf %29, %31 : vector<16x5xf32>
    %33 = arith.addf %27, %32 : vector<16x5xf32>
    %cst_9 = arith.constant 1.000000e+00 : f32
    %34 = vector.broadcast %cst_9 : f32 to vector<16x5xf32>
    %35 = arith.subf %34, %33 : vector<16x5xf32>
    %36 = arith.mulf %35, %35 : vector<16x5xf32>
    %37 = arith.mulf %26, %36 : vector<16x5xf32>
    %cst_10 = arith.constant 2.500000e-01 : f32
    %38 = vector.broadcast %cst_10 : f32 to vector<16x5xf32>
    %39 = arith.mulf %38, %7 : vector<16x5xf32>
    %cst_11 = arith.constant 1.000000e+00 : f32
    %40 = vector.broadcast %cst_11 : f32 to vector<16x5xf32>
    %41 = arith.subf %40, %7 : vector<16x5xf32>
    %cst_12 = arith.constant 7.500000e-01 : f32
    %42 = vector.broadcast %cst_12 : f32 to vector<16x5xf32>
    %43 = arith.mulf %42, %41 : vector<16x5xf32>
    %44 = arith.addf %39, %43 : vector<16x5xf32>
    %45 = arith.mulf %44, %37 : vector<16x5xf32>
    %46 = vector.shape_cast %45 : vector<16x5xf32> to vector<1x16x5xf32>
    %cst_13 = arith.constant dense<0.000000e+00> : vector<1xf32>
    %47 = vector.multi_reduction <add>, %46, %cst_13 [1, 2] : vector<1x16x5xf32> to vector<1xf32>
    %48 = vector.shape_cast %47 : vector<1xf32> to vector<1x1x1xf32>
    %49 = vector.extract %48[0, 0, 0] : f32 from vector<1x1x1xf32>
    %50 = vector.broadcast %49 : f32 to vector<1x1xf32>
    %c0_14 = arith.constant 0 : index
    %c0_15 = arith.constant 0 : index
    %51 = vector.load %arg1[%c0_14, %c0_15] : memref<16x4xf32, #tpu.memory_space<vmem>>, vector<16x4xf32>
    %52 = vector.extract_strided_slice %0 {offsets = [0, 1], sizes = [16, 1], strides = [1, 1]} : vector<32x3xi32> to vector<16x1xi32>
    %53 = tpu.iota {dimensions = array<i32: 1>} : vector<16x4xi32>
    %cst_16 = arith.constant dense<0xFF800000> : vector<16xf32>
    %54 = vector.multi_reduction <maximumf>, %51, %cst_16 [1] : vector<16x4xf32> to vector<16xf32>
    %55 = vector.shape_cast %54 : vector<16xf32> to vector<16x1xf32>
    %56 = vector.broadcast %55 : vector<16x1xf32> to vector<16x4xf32>
    %57 = arith.subf %51, %56 : vector<16x4xf32>
    %58 = math.exp %57 : vector<16x4xf32>
    %cst_17 = arith.constant dense<0.000000e+00> : vector<16xf32>
    %59 = vector.multi_reduction <add>, %58, %cst_17 [1] : vector<16x4xf32> to vector<16xf32>
    %60 = vector.shape_cast %59 : vector<16xf32> to vector<16x1xf32>
    %61 = math.log %60 : vector<16x1xf32>
    %62 = arith.addf %55, %61 : vector<16x1xf32>
    %63 = vector.broadcast %52 : vector<16x1xi32> to vector<16x4xi32>
    %64 = arith.cmpi eq, %53, %63 : vector<16x4xi32>
    %cst_18 = arith.constant 0.000000e+00 : f32
    %65 = vector.broadcast %cst_18 : f32 to vector<16x4xf32>
    %66 = arith.select %64, %51, %65 : vector<16x4xi1>, vector<16x4xf32>
    %cst_19 = arith.constant dense<0.000000e+00> : vector<16xf32>
    %67 = vector.multi_reduction <add>, %66, %cst_19 [1] : vector<16x4xf32> to vector<16xf32>
    %68 = vector.shape_cast %67 : vector<16xf32> to vector<16x1xf32>
    %69 = arith.subf %62, %68 : vector<16x1xf32>
    %70 = vector.shape_cast %69 : vector<16x1xf32> to vector<1x16x1xf32>
    %cst_20 = arith.constant dense<0.000000e+00> : vector<1xf32>
    %71 = vector.multi_reduction <add>, %70, %cst_20 [1, 2] : vector<1x16x1xf32> to vector<1xf32>
    %72 = vector.shape_cast %71 : vector<1xf32> to vector<1x1x1xf32>
    %73 = vector.extract %72[0, 0, 0] : f32 from vector<1x1x1xf32>
    %74 = vector.broadcast %73 : f32 to vector<1x1xf32>
    %c0_21 = arith.constant 0 : index
    %c0_22 = arith.constant 0 : index
    %75 = vector.load %arg3[%c0_21, %c0_22] : memref<32x128xbf16, #tpu.memory_space<vmem>>, vector<32x128xbf16>
    %c0_23 = arith.constant 0 : index
    %c0_24 = arith.constant 0 : index
    %76 = vector.load %arg4[%c0_23, %c0_24] : memref<128x128xbf16, #tpu.memory_space<vmem>>, vector<128x128xbf16>
    %cst_25 = arith.constant dense<0.000000e+00> : vector<32x128xf32>
    %77 = tpu.matmul %75, %76, %cst_25 {dimension_numbers = #tpu.dot_dimension_numbers<[1], [0], [0], [1], [0, 0, 1, 1], [], []>} : vector<32x128xbf16>, vector<128x128xbf16>, vector<32x128xf32> -> vector<32x128xf32>
    %78 = vector.extract_strided_slice %0 {offsets = [0, 2], sizes = [32, 1], strides = [1, 1]} : vector<32x3xi32> to vector<32x1xi32>
    %79 = tpu.iota {dimensions = array<i32: 1>} : vector<32x128xi32>
    %c0_i32 = arith.constant 0 : i32
    %80 = vector.broadcast %c0_i32 : i32 to vector<32x1xi32>
    %81 = arith.cmpi sge, %78, %80 : vector<32x1xi32>
    %82 = arith.extui %81 : vector<32x1xi1> to vector<32x1xi32>
    %83 = arith.sitofp %82 : vector<32x1xi32> to vector<32x1xf32>
    %c4_i32 = arith.constant 4 : i32
    %84 = vector.broadcast %c4_i32 : i32 to vector<32x128xi32>
    %85 = arith.cmpi slt, %79, %84 : vector<32x128xi32>
    %cst_26 = arith.constant -1.000000e+30 : f32
    %86 = vector.broadcast %cst_26 : f32 to vector<32x128xf32>
    %87 = arith.select %85, %77, %86 : vector<32x128xi1>, vector<32x128xf32>
    %cst_27 = arith.constant dense<0xFF800000> : vector<32xf32>
    %88 = vector.multi_reduction <maximumf>, %87, %cst_27 [1] : vector<32x128xf32> to vector<32xf32>
    %89 = vector.shape_cast %88 : vector<32xf32> to vector<32x1xf32>
    %90 = vector.broadcast %89 : vector<32x1xf32> to vector<32x128xf32>
    %91 = arith.subf %87, %90 : vector<32x128xf32>
    %92 = math.exp %91 : vector<32x128xf32>
    %cst_28 = arith.constant dense<0.000000e+00> : vector<32xf32>
    %93 = vector.multi_reduction <add>, %92, %cst_28 [1] : vector<32x128xf32> to vector<32xf32>
    %94 = vector.shape_cast %93 : vector<32xf32> to vector<32x1xf32>
    %95 = math.log %94 : vector<32x1xf32>
    %96 = arith.addf %89, %95 : vector<32x1xf32>
    %97 = vector.broadcast %78 : vector<32x1xi32> to vector<32x128xi32>
    %98 = arith.cmpi eq, %79, %97 : vector<32x128xi32>
    %cst_29 = arith.constant 0.000000e+00 : f32
    %99 = vector.broadcast %cst_29 : f32 to vector<32x128xf32>
    %100 = arith.select %98, %77, %99 : vector<32x128xi1>, vector<32x128xf32>
    %cst_30 = arith.constant dense<0.000000e+00> : vector<32xf32>
    %101 = vector.multi_reduction <add>, %100, %cst_30 [1] : vector<32x128xf32> to vector<32xf32>
    %102 = vector.shape_cast %101 : vector<32xf32> to vector<32x1xf32>
    %103 = arith.subf %96, %102 : vector<32x1xf32>
    %104 = arith.mulf %103, %83 : vector<32x1xf32>
    %105 = vector.shape_cast %104 : vector<32x1xf32> to vector<1x32x1xf32>
    %cst_31 = arith.constant dense<0.000000e+00> : vector<1xf32>
    %106 = vector.multi_reduction <add>, %105, %cst_31 [1, 2] : vector<1x32x1xf32> to vector<1xf32>
    %107 = vector.shape_cast %106 : vector<1xf32> to vector<1x1x1xf32>
    %108 = vector.extract %107[0, 0, 0] : f32 from vector<1x1x1xf32>
    %109 = vector.broadcast %108 : f32 to vector<1x1xf32>
    %c0_32 = arith.constant 0 : index
    %110 = memref.load %arg5[%c0_32] : memref<2xf32, #tpu.memory_space<smem>>
    %cst_33 = arith.constant 1.000000e+00 : f32
    %111 = arith.maximumf %110, %cst_33 : f32
    %c1 = arith.constant 1 : index
    %112 = memref.load %arg5[%c1] : memref<2xf32, #tpu.memory_space<smem>>
    %cst_34 = arith.constant 1.000000e+00 : f32
    %113 = arith.maximumf %112, %cst_34 : f32
    %114 = vector.broadcast %111 : f32 to vector<1x1xf32>
    %115 = arith.divf %50, %114 : vector<1x1xf32>
    %cst_35 = arith.constant 8.000000e+00 : f32
    %116 = vector.broadcast %cst_35 : f32 to vector<1x1xf32>
    %117 = arith.mulf %115, %116 : vector<1x1xf32>
    %cst_36 = arith.constant 6.250000e-02 : f32
    %118 = vector.broadcast %cst_36 : f32 to vector<1x1xf32>
    %119 = arith.mulf %74, %118 : vector<1x1xf32>
    %120 = vector.broadcast %113 : f32 to vector<1x1xf32>
    %121 = arith.divf %109, %120 : vector<1x1xf32>
    %cst_37 = arith.constant 1.000000e+00 : f32
    %122 = vector.broadcast %cst_37 : f32 to vector<1x1xf32>
    %123 = arith.mulf %122, %117 : vector<1x1xf32>
    %cst_38 = arith.constant 1.000000e+00 : f32
    %124 = vector.broadcast %cst_38 : f32 to vector<1x1xf32>
    %125 = arith.mulf %124, %119 : vector<1x1xf32>
    %126 = arith.addf %123, %125 : vector<1x1xf32>
    %cst_39 = arith.constant 1.000000e+00 : f32
    %127 = vector.broadcast %cst_39 : f32 to vector<1x1xf32>
    %128 = arith.mulf %127, %121 : vector<1x1xf32>
    %129 = arith.addf %126, %128 : vector<1x1xf32>
    %130 = tpu.iota {dimensions = array<i32: 1>} : vector<1x128xi32>
    %c0_i32_40 = arith.constant 0 : i32
    %131 = vector.broadcast %c0_i32_40 : i32 to vector<1x128xi32>
    %132 = arith.cmpi eq, %130, %131 : vector<1x128xi32>
    %cst_41 = arith.constant 0.000000e+00 : f32
    %133 = vector.shape_cast %117 : vector<1x1xf32> to vector<1x1xf32>
    %134 = vector.broadcast %133 : vector<1x1xf32> to vector<1x128xf32>
    %135 = vector.broadcast %cst_41 : f32 to vector<1x128xf32>
    %136 = arith.select %132, %134, %135 : vector<1x128xi1>, vector<1x128xf32>
    %c1_i32 = arith.constant 1 : i32
    %137 = vector.broadcast %c1_i32 : i32 to vector<1x128xi32>
    %138 = arith.cmpi eq, %130, %137 : vector<1x128xi32>
    %cst_42 = arith.constant 0.000000e+00 : f32
    %139 = vector.shape_cast %119 : vector<1x1xf32> to vector<1x1xf32>
    %140 = vector.broadcast %139 : vector<1x1xf32> to vector<1x128xf32>
    %141 = vector.broadcast %cst_42 : f32 to vector<1x128xf32>
    %142 = arith.select %138, %140, %141 : vector<1x128xi1>, vector<1x128xf32>
    %143 = arith.addf %136, %142 : vector<1x128xf32>
    %c2_i32 = arith.constant 2 : i32
    %144 = vector.broadcast %c2_i32 : i32 to vector<1x128xi32>
    %145 = arith.cmpi eq, %130, %144 : vector<1x128xi32>
    %cst_43 = arith.constant 0.000000e+00 : f32
    %146 = vector.shape_cast %121 : vector<1x1xf32> to vector<1x1xf32>
    %147 = vector.broadcast %146 : vector<1x1xf32> to vector<1x128xf32>
    %148 = vector.broadcast %cst_43 : f32 to vector<1x128xf32>
    %149 = arith.select %145, %147, %148 : vector<1x128xi1>, vector<1x128xf32>
    %150 = arith.addf %143, %149 : vector<1x128xf32>
    %c3_i32 = arith.constant 3 : i32
    %151 = vector.broadcast %c3_i32 : i32 to vector<1x128xi32>
    %152 = arith.cmpi eq, %130, %151 : vector<1x128xi32>
    %cst_44 = arith.constant 0.000000e+00 : f32
    %153 = vector.shape_cast %129 : vector<1x1xf32> to vector<1x1xf32>
    %154 = vector.broadcast %153 : vector<1x1xf32> to vector<1x128xf32>
    %155 = vector.broadcast %cst_44 : f32 to vector<1x128xf32>
    %156 = arith.select %152, %154, %155 : vector<1x128xi1>, vector<1x128xf32>
    %157 = arith.addf %150, %156 : vector<1x128xf32>
    %c0_45 = arith.constant 0 : index
    %c0_46 = arith.constant 0 : index
    %158 = vector.load %arg6[%c0_45, %c0_46] : memref<1x128xf32, #tpu.memory_space<vmem>>, vector<1x128xf32>
    tpu.vector_store %arg6[%c0_45, %c0_46], %157 {strides = array<i32>} : memref<1x128xf32, #tpu.memory_space<vmem>>, vector<1x128xf32>,
    return
  }
}

</mosaic_0001>

<llo_original>
// kernel: _device_forward.1
$region0: #{_device_forward.1}
  #allocation0 [shape = 'u32[]', space=smem, size = 0x4, offset = 0x4, fixed_abs, tag = 'smem constant byte address 0x4 - core index']
  #allocation1 [shape = 'u32[144,128]{1,0:T(1,128)}', space=vmem, size = 0x12000, scoped, tag = 'internal scratch']
  %s0 = inlined_call_operand.vmem [shape: f32[16,5], index: 0, kind: input, shape index: {}]
  %s1 = inlined_call_operand.vmem [shape: f32[16,4], index: 1, kind: input, shape index: {}]
  %s2 = inlined_call_operand.vmem [shape: s32[32,3], index: 2, kind: input, shape index: {}]
  %s3 = inlined_call_operand.vmem [shape: bf16[32,128], index: 3, kind: input, shape index: {}]
  %s4 = inlined_call_operand.vmem [shape: bf16[128,128], index: 4, kind: input, shape index: {}]
  %s5 = inlined_call_operand.vmem [shape: f32[2], index: 5, kind: input, shape index: {}]
  %s6 = inlined_call_operand.vmem [shape: f32[1,128], index: 6, kind: output, shape index: {}]
  %s7 = sld [smem:[#allocation0]]
  $region38: #{_device_forward.1} parent=0
    _
  %s9 = ssub.s32 1, %s7
  %s10 = scalar_select 0, %s9, %s7
  $region1: #{_device_forward.1} parent=0
    #allocation2 [shape = 'u8[512]{0}', space=smem, size = 0x200, scoped, tag = 'input window, operand 5, single buffered']
    #allocation3 [shape = 's32[1]{0}', space=sflag, size = 0x4, scoped, tag = 'scoped memory for _device_forward.1']
    %11 = vsyncpa [#allocation3], 0
    // Predicated region
    $region2: #{_device_forward.1} parent=1 // pred_check
      _
    $region3: #{_device_forward.1} parent=1 // pred_check_branch
      %13 = sbr.rel (0) target = $region5
    $region4: #{_device_forward.1} parent=1 // pred_region
      _
    $region5: #{_device_forward.1} parent=1 // pred_fallthru
      _
    // Predicated region
    $region6: #{_device_forward.1} parent=1 // pred_check
      _
    $region7: #{_device_forward.1} parent=1 // pred_check_branch
      %15 = sbr.rel (0) target = $region9
    $region8: #{_device_forward.1} parent=1 // pred_region
      _
    $region9: #{_device_forward.1} parent=1 // pred_fallthru
      _
    // Predicated region
    $region10: #{_device_forward.1} parent=1 // pred_check
      _
    $region11: #{_device_forward.1} parent=1 // pred_check_branch
      %17 = sbr.rel (0) target = $region13
    $region12: #{_device_forward.1} parent=1 // pred_region
      _
    $region13: #{_device_forward.1} parent=1 // pred_fallthru
      _
    // Predicated region
    $region14: #{_device_forward.1} parent=1 // pred_check
      _
    $region15: #{_device_forward.1} parent=1 // pred_check_branch
      %19 = sbr.rel (0) target = $region17
    $region16: #{_device_forward.1} parent=1 // pred_region
      _
    $region17: #{_device_forward.1} parent=1 // pred_fallthru
      _
    // Predicated region
    $region18: #{_device_forward.1} parent=1 // pred_check
      _
    $region19: #{_device_forward.1} parent=1 // pred_check_branch
      %21 = sbr.rel (0) target = $region21
    $region20: #{_device_forward.1} parent=1 // pred_region
      _
    $region21: #{_device_forward.1} parent=1 // pred_fallthru
      _
    // Predicated region
    $region22: #{_device_forward.1} parent=1 // pred_check
      _
    $region23: #{_device_forward.1} parent=1 // pred_check_branch
      %23 = sbr.rel (0) target = $region25
    $region24: #{_device_forward.1} parent=1 // pred_region
      %s25 = ssub.s32 16, 16
      %26 = vsyncadd [#allocation3], %s25
      %s28 = sshll.u32 %s5, 4
      %s29 = int_to_ptr.vmem [resolvable:$true] %s28
      %31 = dma.vmem_to_smem %s29, 16, [#allocation2], [#allocation3]
    $region25: #{_device_forward.1} parent=1 // pred_fallthru
      _
    // Predicated region
    $region26: #{_device_forward.1} parent=1 // pred_check
      _
    $region27: #{_device_forward.1} parent=1 // pred_check_branch
      %33 = sbr.rel (0) target = $region29
    $region28: #{_device_forward.1} parent=1 // pred_region
      %34 = dma.done [#allocation3], 16
    $region29: #{_device_forward.1} parent=1 // pred_fallthru
      _
    %35 = sfence
    %v37 = vld [vmem:[%s2] sm:$0xff]
    %v38 = vld [vmem:[%s2 + $0x8] sm:$0xff]
    %v39 = vld [vmem:[%s2 + $0x10] sm:$0xff]
    %v40 = vld [vmem:[%s2 + $0x18] sm:$0xff]
    %v41 = vld [vmem:[%s0] sm:$0xff]
    %v42 = vld [vmem:[%s0 + $0x8] sm:$0xff]
    %v43 = vlaneseq
    %v44 = vand.u32 %v43, 127
    %45 = vset.pattern.permute.xlu0 0
    %46 = vperm.xlu0 %45, %v37
    %v47 = vpop.permute.xlu0 %46
    %48 = vset.pattern.permute.xlu0 0
    %49 = vperm.xlu0 %48, %v38
    %v50 = vpop.permute.xlu0 %49
    %vm51 = vcmp.eq.s32.totalorder %v44, %v47
    %vm52 = vcmp.eq.s32.totalorder %v44, %v50
    %v53 = vsel %vm51, 1, 0
    %v54 = vsel %vm52, 1, 0
    %v55 = vcvt.s32.f32 %v53
    %v56 = vcvt.s32.f32 %v54
    %v57 = vand.u32 2147483647, %v41
    %v58 = vand.u32 2147483647, %v42
    %v59 = vsub.f32 0.0, %v57
    %v60 = vsub.f32 0.0, %v58
    %v61 = vmul.f32 %v59, 1.442695
    %v62 = vpow.pop %v61
    %v63 = vmul.f32 %v60, 1.442695
    %v64 = vpow.pop %v63
    %v65 = vadd.f32 %v62, 1.0
    %v66 = vadd.f32 %v64, 1.0
    %v67 = vrcp.pop %v65
    %v68 = vrcp.pop %v66
    %vm69 = vcmp.ge.f32.partialorder %v41, 0.0
    %vm70 = vcmp.ge.f32.partialorder %v42, 0.0
    %v71 = vmul.f32 %v62, %v67
    %v72 = vmul.f32 %v64, %v68
    %v73 = vsel %vm69, %v67, %v71
    %v74 = vsel %vm70, %v68, %v72
    %v75 = vmax.f32 %v41, 0.0
    %v76 = vmax.f32 %v42, 0.0
    %v77 = vmul.f32 %v41, %v55
    %v78 = vmul.f32 %v42, %v56
    %v79 = vsub.f32 %v75, %v77
    %v80 = vsub.f32 %v76, %v78
    %v81 = vlog2.pop %v65
    %v82 = vmul.f32 %v81, 0.6931472
    %v83 = vlog2.pop %v66
    %v84 = vmul.f32 %v83, 0.6931472
    %v85 = vadd.f32 %v79, %v82
    %v86 = vadd.f32 %v80, %v84
    %v87 = vmul.f32 %v73, %v55
    %v88 = vmul.f32 %v74, %v56
    %v89 = vsub.f32 1.0, %v73
    %v90 = vsub.f32 1.0, %v74
    %v91 = vsub.f32 1.0, %v55
    %v92 = vsub.f32 1.0, %v56
    %v93 = vmul.f32 %v89, %v91
    %v94 = vmul.f32 %v90, %v92
    %v95 = vadd.f32 %v87, %v93
    %v96 = vadd.f32 %v88, %v94
    %v97 = vsub.f32 1.0, %v95
    %v98 = vsub.f32 1.0, %v96
    %v99 = vmul.f32 %v97, %v97
    %v100 = vmul.f32 %v98, %v98
    %v101 = vmul.f32 %v85, %v99
    %v102 = vmul.f32 %v86, %v100
    %v103 = vmul.f32 %v55, 0.25
    %v104 = vmul.f32 %v56, 0.25
    %v105 = vmul.f32 %v91, 0.75
    %v106 = vmul.f32 %v92, 0.75
    %v107 = vadd.f32 %v103, %v105
    %v108 = vadd.f32 %v104, %v106
    %v109 = vmul.f32 %v107, %v101
    %v110 = vmul.f32 %v108, %v102
    %vm111 = vcmask 39936
    %v112 = vsel %vm111, %v109, 0.0
    %v113 = vsel %vm111, %v110, 0.0
    %v114 = vadd.f32 %v112, %v113
    %115 = vadd.xlane.f32.xlu0 %v114
    %v116 = vpop.xlane.xlu0 %115
    %v117 = vrot.slane %v116, 4
    %v118 = vadd.f32 %v116, %v117
    %v119 = vrot.slane %v118, 2
    %v120 = vadd.f32 %v118, %v119
    %v121 = vrot.slane %v120, 1
    %v122 = vadd.f32 %v120, %v121
    %s123 = vtos %v122
    %v124 = vstv %s123
    %v125 = vld [vmem:[%s1] sm:$0xff]
    %v126 = vld [vmem:[%s1 + $0x8] sm:$0xff]
    %vm127 = vcmask 31744
    %v128 = vsel %vm127, %v125, -inf
    %129 = vmax.xlane.f32.xlu0 %v128
    %v130 = vpop.xlane.xlu0 %129
    %v131 = vsel %vm127, %v126, -inf
    %132 = vmax.xlane.f32.xlu0 %v131
    %v133 = vpop.xlane.xlu0 %132
    %v134 = vsub.f32 %v125, %v130
    %v135 = vsub.f32 %v126, %v133
    %v136 = vmul.f32 %v134, 1.442695
    %v137 = vpow.pop %v136
    %v138 = vmul.f32 %v135, 1.442695
    %v139 = vpow.pop %v138
    %v140 = vsel %vm127, %v137, 0.0
    %141 = vadd.xlane.f32.xlu0 %v140
    %v142 = vpop.xlane.xlu0 %141
    %v143 = vsel %vm127, %v139, 0.0
    %144 = vadd.xlane.f32.xlu0 %v143
    %v145 = vpop.xlane.xlu0 %144
    %v146 = vlog2.pop %v142
    %v147 = vmul.f32 %v146, 0.6931472
    %v148 = vlog2.pop %v145
    %v149 = vmul.f32 %v148, 0.6931472
    %v150 = vadd.f32 %v130, %v147
    %v151 = vadd.f32 %v133, %v149
    %152 = vset.pattern.permute.xlu0 1
    %153 = vperm.xlu0 %152, %v37
    %v154 = vpop.permute.xlu0 %153
    %155 = vset.pattern.permute.xlu0 1
    %156 = vperm.xlu0 %155, %v38
    %v157 = vpop.permute.xlu0 %156
    %vm158 = vcmp.eq.s32.totalorder %v44, %v154
    %vm159 = vcmp.eq.s32.totalorder %v44, %v157
    %v160 = vsel %vm158, %v125, 0.0
    %v161 = vsel %vm159, %v126, 0.0
    %v162 = vsel %vm127, %v160, 0.0
    %163 = vadd.xlane.f32.xlu0 %v162
    %v164 = vpop.xlane.xlu0 %163
    %v165 = vsel %vm127, %v161, 0.0
    %166 = vadd.xlane.f32.xlu0 %v165
    %v167 = vpop.xlane.xlu0 %166
    %v168 = vsub.f32 %v150, %v164
    %v169 = vsub.f32 %v151, %v167
    %vm170 = vcmask 7168
    %v171 = vsel %vm170, %v168, 0.0
    %v172 = vsel %vm170, %v169, 0.0
    %v173 = vadd.f32 %v171, %v172
    %174 = vadd.xlane.f32.xlu0 %v173
    %v175 = vpop.xlane.xlu0 %174
    %v176 = vrot.slane %v175, 4
    %v177 = vadd.f32 %v175, %v176
    %v178 = vrot.slane %v177, 2
    %v179 = vadd.f32 %v177, %v178
    %v180 = vrot.slane %v179, 1
    %v181 = vadd.f32 %v179, %v180
    %s182 = vtos %v181
    %v183 = vstv %s182
    %v184 = vld [vmem:[%s3] sm:$0xf]
    %v185 = vld [vmem:[%s3 + $0x4] sm:$0xf]
    %v186 = vld [vmem:[%s3 + $0x8] sm:$0xf]
    %v187 = vld [vmem:[%s3 + $0xc] sm:$0xf]
    %v188 = vld [vmem:[%s4] sm:$0xf]
    %v189 = vld [vmem:[%s4 + $0x4] sm:$0xf]
    %v190 = vld [vmem:[%s4 + $0x8] sm:$0xf]
    %v191 = vld [vmem:[%s4 + $0xc] sm:$0xf]
    %v192 = vld [vmem:[%s4 + $0x10] sm:$0xf]
    %v193 = vld [vmem:[%s4 + $0x14] sm:$0xf]
    %v194 = vld [vmem:[%s4 + $0x18] sm:$0xf]
    %v195 = vld [vmem:[%s4 + $0x1c] sm:$0xf]
    %v196 = vld [vmem:[%s4 + $0x20] sm:$0xf]
    %v197 = vld [vmem:[%s4 + $0x24] sm:$0xf]
    %v198 = vld [vmem:[%s4 + $0x28] sm:$0xf]
    %v199 = vld [vmem:[%s4 + $0x2c] sm:$0xf]
    %v200 = vld [vmem:[%s4 + $0x30] sm:$0xf]
    %v201 = vld [vmem:[%s4 + $0x34] sm:$0xf]
    %v202 = vld [vmem:[%s4 + $0x38] sm:$0xf]
    %v203 = vld [vmem:[%s4 + $0x3c] sm:$0xf]
    %v208 = vunpack.c.l.b16 %v184
    %v209 = vunpack.c.l.b16 %v185
    %v210 = vunpack.c.l.b16 %v186
    %v211 = vunpack.c.l.b16 %v187
    %v212 = vpack.c.b16 %v209, %v208
    %v213 = vpack.c.b16 %v211, %v210
    %v232 = vunpack.c.l.b16 %v188
    %v233 = vunpack.c.l.b16 %v189
    %v234 = vunpack.c.l.b16 %v190
    %v235 = vunpack.c.l.b16 %v191
    %v236 = vunpack.c.l.b16 %v192
    %v237 = vunpack.c.l.b16 %v193
    %v238 = vunpack.c.l.b16 %v194
    %v239 = vunpack.c.l.b16 %v195
    %v240 = vunpack.c.l.b16 %v196
    %v241 = vunpack.c.l.b16 %v197
    %v242 = vunpack.c.l.b16 %v198
    %v243 = vunpack.c.l.b16 %v199
    %v244 = vunpack.c.l.b16 %v200
    %v245 = vunpack.c.l.b16 %v201
    %v246 = vunpack.c.l.b16 %v202
    %v247 = vunpack.c.l.b16 %v203
    %v248 = vpack.c.b16 %v233, %v232
    %v249 = vpack.c.b16 %v235, %v234
    %v250 = vpack.c.b16 %v237, %v236
    %v251 = vpack.c.b16 %v239, %v238
    %v252 = vpack.c.b16 %v241, %v240
    %v253 = vpack.c.b16 %v243, %v242
    %v254 = vpack.c.b16 %v245, %v244
    %v255 = vpack.c.b16 %v247, %v246
    %264 = vmatprep.subr.bf16.mxu0 0
    %265 = vmatpush1.bf16.msra.mxu0 %v248
    %266 = vmatprep.subr.bf16.mxu0 0
    %267 = vmatpush1.bf16.msra.mxu0 %v249
    %268 = vmatprep.subr.bf16.mxu0 0
    %269 = vmatpush1.bf16.msra.mxu0 %v250
    %270 = vmatprep.subr.bf16.mxu0 0
    %271 = vmatpush1.bf16.msra.mxu0 %v251
    %272 = vmatprep.subr.bf16.mxu0 0
    %273 = vmatpush1.bf16.msra.mxu0 %v252
    %274 = vmatprep.subr.bf16.mxu0 0
    %275 = vmatpush1.bf16.msra.mxu0 %v253
    %276 = vmatprep.subr.bf16.mxu0 0
    %277 = vmatpush1.bf16.msra.mxu0 %v254
    %278 = vmatprep.subr.bf16.mxu0 0
    %279 = vmatpush1.bf16.msra.mxu0 %v255
    %280 = vmatprep.subr.bf16.mxu0 0
    %281 = vmatpush1.bf16.msra.mxu0 0
    %282 = vmatprep.subr.bf16.mxu0 0
    %283 = vmatpush1.bf16.msra.mxu0 0
    %284 = vmatprep.subr.bf16.mxu0 0
    %285 = vmatpush1.bf16.msra.mxu0 0
    %286 = vmatprep.subr.bf16.mxu0 0
    %287 = vmatpush1.bf16.msra.mxu0 0
    %288 = vmatprep.subr.bf16.mxu0 0
    %289 = vmatpush1.bf16.msra.mxu0 0
    %290 = vmatprep.subr.bf16.mxu0 0
    %291 = vmatpush1.bf16.msra.mxu0 0
    %292 = vmatprep.subr.bf16.mxu0 0
    %293 = vmatpush1.bf16.msra.mxu0 0
    %294 = vmatprep.subr.bf16.mxu0 0
    %295 = vmatpush1.bf16.msra.mxu0 0
    %296 = vmatprep.mubr.bf16.mxu0 0
    %297 = vmatmul.mubr.bf16.gmra.mrb[0].mxu0 %v212
    %v298 = vpop.f32.mrb[0].mxu0
    %v299 = vadd.f32 0.0, %v298
    %v300 = vpop.f32.mrb[0].mxu0
    %v301 = vpop.f32.mrb[0].mxu0
    %v302 = vadd.f32 0.0, %v301
    %v303 = vpop.f32.mrb[0].mxu0
    %304 = vmatprep.mubr.bf16.mxu0 0
    %305 = vmatmul.mubr.bf16.gmra.mrb[0].mxu0 %v213
    %v306 = vpop.f32.mrb[0].mxu0
    %v307 = vadd.f32 0.0, %v306
    %v308 = vpop.f32.mrb[0].mxu0
    %v309 = vpop.f32.mrb[0].mxu0
    %v310 = vadd.f32 0.0, %v309
    %v311 = vpop.f32.mrb[0].mxu0
    %312 = vdwg.mxu0
    %vm313 = vcmp.ge.s32.totalorder %v37, 0
    %vm314 = vcmp.ge.s32.totalorder %v38, 0
    %vm315 = vcmp.ge.s32.totalorder %v39, 0
    %vm316 = vcmp.ge.s32.totalorder %v40, 0
    %v317 = vsel %vm313, 1, 0
    %v318 = vsel %vm314, 1, 0
    %v319 = vsel %vm315, 1, 0
    %v320 = vsel %vm316, 1, 0
    %v321 = vcvt.s32.f32 %v317
    %v322 = vcvt.s32.f32 %v318
    %v323 = vcvt.s32.f32 %v319
    %v324 = vcvt.s32.f32 %v320
    %vm325 = vcmp.lt.s32.totalorder %v44, 4
    %v326 = vsel %vm325, %v299, -1e+30
    %v327 = vsel %vm325, %v302, -1e+30
    %v328 = vsel %vm325, %v307, -1e+30
    %v329 = vsel %vm325, %v310, -1e+30
    %330 = vmax.xlane.f32.xlu0 %v326
    %v331 = vpop.xlane.xlu0 %330
    %332 = vmax.xlane.f32.xlu0 %v327
    %v333 = vpop.xlane.xlu0 %332
    %334 = vmax.xlane.f32.xlu0 %v328
    %v335 = vpop.xlane.xlu0 %334
    %336 = vmax.xlane.f32.xlu0 %v329
    %v337 = vpop.xlane.xlu0 %336
    %v338 = vsub.f32 %v326, %v331
    %v339 = vsub.f32 %v327, %v333
    %v340 = vsub.f32 %v328, %v335
    %v341 = vsub.f32 %v329, %v337
    %v342 = vmul.f32 %v338, 1.442695
    %v343 = vpow.pop %v342
    %v344 = vmul.f32 %v339, 1.442695
    %v345 = vpow.pop %v344
    %v346 = vmul.f32 %v340, 1.442695
    %v347 = vpow.pop %v346
    %v348 = vmul.f32 %v341, 1.442695
    %v349 = vpow.pop %v348
    %350 = vadd.xlane.f32.xlu0 %v343
    %v351 = vpop.xlane.xlu0 %350
    %352 = vadd.xlane.f32.xlu0 %v345
    %v353 = vpop.xlane.xlu0 %352
    %354 = vadd.xlane.f32.xlu0 %v347
    %v355 = vpop.xlane.xlu0 %354
    %356 = vadd.xlane.f32.xlu0 %v349
    %v357 = vpop.xlane.xlu0 %356
    %v358 = vlog2.pop %v351
    %v359 = vmul.f32 %v358, 0.6931472
    %v360 = vlog2.pop %v353
    %v361 = vmul.f32 %v360, 0.6931472
    %v362 = vlog2.pop %v355
    %v363 = vmul.f32 %v362, 0.6931472
    %v364 = vlog2.pop %v357
    %v365 = vmul.f32 %v364, 0.6931472
    %v366 = vadd.f32 %v331, %v359
    %v367 = vadd.f32 %v333, %v361
    %v368 = vadd.f32 %v335, %v363
    %v369 = vadd.f32 %v337, %v365
    %370 = vset.pattern.permute.xlu0 2
    %371 = vperm.xlu0 %370, %v37
    %v372 = vpop.permute.xlu0 %371
    %373 = vset.pattern.permute.xlu0 2
    %374 = vperm.xlu0 %373, %v38
    %v375 = vpop.permute.xlu0 %374
    %376 = vset.pattern.permute.xlu0 2
    %377 = vperm.xlu0 %376, %v39
    %v378 = vpop.permute.xlu0 %377
    %379 = vset.pattern.permute.xlu0 2
    %380 = vperm.xlu0 %379, %v40
    %v381 = vpop.permute.xlu0 %380
    %vm382 = vcmp.eq.s32.totalorder %v44, %v372
    %vm383 = vcmp.eq.s32.totalorder %v44, %v375
    %vm384 = vcmp.eq.s32.totalorder %v44, %v378
    %vm385 = vcmp.eq.s32.totalorder %v44, %v381
    %v386 = vsel %vm382, %v299, 0.0
    %v387 = vsel %vm383, %v302, 0.0
    %v388 = vsel %vm384, %v307, 0.0
    %v389 = vsel %vm385, %v310, 0.0
    %390 = vadd.xlane.f32.xlu0 %v386
    %v391 = vpop.xlane.xlu0 %390
    %392 = vadd.xlane.f32.xlu0 %v387
    %v393 = vpop.xlane.xlu0 %392
    %394 = vadd.xlane.f32.xlu0 %v388
    %v395 = vpop.xlane.xlu0 %394
    %396 = vadd.xlane.f32.xlu0 %v389
    %v397 = vpop.xlane.xlu0 %396
    %v398 = vsub.f32 %v366, %v391
    %v399 = vsub.f32 %v367, %v393
    %v400 = vsub.f32 %v368, %v395
    %v401 = vsub.f32 %v369, %v397
    %v402 = vmul.f32 %v398, %v321
    %v403 = vmul.f32 %v399, %v322
    %v404 = vmul.f32 %v400, %v323
    %v405 = vmul.f32 %v401, %v324
    %410 = vrot.lane.b32.xlu0 %v402, 126
    %v411 = vpop.permute.xlu0 %410
    %412 = vrot.lane.b32.xlu0 %v403, 126
    %v413 = vpop.permute.xlu0 %412
    %414 = vrot.lane.b32.xlu0 %v404, 126
    %v415 = vpop.permute.xlu0 %414
    %416 = vrot.lane.b32.xlu0 %v405, 126
    %v417 = vpop.permute.xlu0 %416
    %v422 = vsel %vm170, %v411, 0.0
    %v423 = vsel %vm170, %v413, 0.0
    %v424 = vadd.f32 %v422, %v423
    %v425 = vsel %vm170, %v415, 0.0
    %v426 = vadd.f32 %v424, %v425
    %v427 = vsel %vm170, %v417, 0.0
    %v428 = vadd.f32 %v426, %v427
    %429 = vadd.xlane.f32.xlu0 %v428
    %v430 = vpop.xlane.xlu0 %429
    %v431 = vrot.slane %v430, 4
    %v432 = vadd.f32 %v430, %v431
    %v433 = vrot.slane %v432, 2
    %v434 = vadd.f32 %v432, %v433
    %v435 = vrot.slane %v434, 1
    %v436 = vadd.f32 %v434, %v435
    %s437 = vtos %v436
    %v438 = vstv %s437
    %s439 = sld [smem:[#allocation2]]
    %s440 = smax.f32 %s439, 1.0
    %s441 = sld [smem:[#allocation2 + $0x1]]
    %s442 = smax.f32 %s441, 1.0
    %v443 = vstv %s440
    %v444 = vrcp.pop %v443
    %v445 = vmul.f32 %v124, %v444
    %v446 = vmul.f32 %v445, 8.0
    %v447 = vmul.f32 %v183, 0.0625
    %v448 = vstv %s442
    %v449 = vrcp.pop %v448
    %v450 = vmul.f32 %v438, %v449
    %v451 = vadd.f32 %v446, %v447
    %v452 = vadd.f32 %v451, %v450
    %vm453 = vcmp.eq.s32.totalorder %v44, 0
    %v454 = vsel %vm453, %v446, 0.0
    %vm455 = vcmp.eq.s32.totalorder %v44, 1
    %v456 = vsel %vm455, %v447, 0.0
    %v457 = vadd.f32 %v454, %v456
    %vm458 = vcmp.eq.s32.totalorder %v44, 2
    %v459 = vsel %vm458, %v450, 0.0
    %v460 = vadd.f32 %v457, %v459
    %vm461 = vcmp.eq.s32.totalorder %v44, 3
    %v462 = vsel %vm461, %v452, 0.0
    %v463 = vadd.f32 %v460, %v462
    %464 = vst [vmem:[%s6] sm:$0x1] %v463
    // Predicated region
    $region30: #{_device_forward.1} parent=1 // pred_check
      _
    $region31: #{_device_forward.1} parent=1 // pred_check_branch
      %466 = sbr.rel (0) target = $region33
    $region32: #{_device_forward.1} parent=1 // pred_region
      _
    $region33: #{_device_forward.1} parent=1 // pred_fallthru
      _
    // Predicated region
    $region34: #{_device_forward.1} parent=1 // pred_check
      _
    $region35: #{_device_forward.1} parent=1 // pred_check_branch
      %468 = sbr.rel (0) target = $region37
    $region36: #{_device_forward.1} parent=1 // pred_region
      _
    $region37: #{_device_forward.1} parent=1 // pred_fallthru
      _
    %469 = vsyncpa [#allocation3], 1

</llo_original>
